<compile_context>
chip_gen: v7x
topology: tpu7x:2x2x1
jax: 0.10.0
libtpu: 0.0.40
codegen_flags: <defaults>
</compile_context>

<pallas_src>
import functools
import math

import jax
import jax.numpy as jnp
from jax.experimental import pallas as pl
from jax.experimental.pallas import tpu as pltpu


def _round_up(n: int, m: int) -> int:
    return ((n + m - 1) // m) * m


def _kmax_kernel(x_ref, o_ref, *, top_k: int):
    """Iterative top-k selection along the last axis of one (TM, L) tile.

    For each of the (static, small) top_k steps:
      1. row-wise max of the remaining values (XLU reduce),
      2. write it straight into its output column (bounds live ranges),
      3. knock out only the FIRST occurrence of that max so duplicate values
         are returned with full multiplicity, matching torch.topk.
    Pure VPU selects + XLU reductions; everything stays in the native dtype.
    """
    x = x_ref[...]
    rows, length = x.shape
    pos = jax.lax.broadcasted_iota(jnp.int32, (rows, length), 1)
    if jnp.issubdtype(x.dtype, jnp.floating):
        knock = jnp.array(-jnp.inf, dtype=x.dtype)
    else:
        knock = jnp.array(jnp.iinfo(x.dtype).min, dtype=x.dtype)

    cur = x
    for k in range(top_k):  # static unroll: top_k is a small compile-time const
        m = jnp.max(cur, axis=-1, keepdims=True)                 # (rows, 1)
        o_ref[:, k:k + 1] = m.astype(o_ref.dtype)                # emit now
        if k + 1 < top_k:
            # first occurrence of the current max -> knock out exactly one elem
            masked_pos = jnp.where(cur == m, pos, jnp.int32(length))
            first = jnp.min(masked_pos, axis=-1, keepdims=True)  # (rows, 1)
            cur = jnp.where(pos == first, knock, cur)


def k_max_pooling(x, top_k: int = 8, *, block_rows=None):
    """JAX/Pallas equivalent of KMaxPooling.forward (top_k along last axis)."""
    *lead, length = x.shape
    assert top_k <= length, "top_k must not exceed the last-axis length"

    if top_k == length:
        # torch.topk(k=L, sorted=False) returns every element in an
        # unspecified order; the identity is a valid answer -> skip the kernel.
        return x

    rows = math.prod(lead) if lead else 1
    x2 = x.reshape(rows, length)

    itemsize = jnp.dtype(x.dtype).itemsize
    if block_rows is None:
        # ~2 MiB input block: double-buffered (+ in-kernel working set) stays
        # well inside the 32 MiB scoped-VMEM limit on v5e/v6e/v7x.
        tm = (2 * 1024 * 1024) // max(1, length * itemsize)
        tm = max(8, min(8192, (tm // 8) * 8))
    else:
        assert block_rows % 8 == 0, "block_rows must be a multiple of 8"
        tm = block_rows
    tm = min(tm, _round_up(rows, 8))

    grid = pl.cdiv(rows, tm)  # partial last block: OOB reads are garbage rows
                              # (row-independent), OOB output writes dropped.

    out2 = pl.pallas_call(
        functools.partial(_kmax_kernel, top_k=top_k),
        out_shape=jax.ShapeDtypeStruct((rows, top_k), x.dtype),
        grid_spec=pl.GridSpec(
            grid=(grid,),
            in_specs=[pl.BlockSpec((tm, length), lambda i: (i, 0))],
            out_specs=pl.BlockSpec((tm, top_k), lambda i: (i, 0)),
        ),
        compiler_params=pltpu.CompilerParams(
            dimension_semantics=("parallel",),      # megacore sharding on v7x
            vmem_limit_bytes=32 * 1024 * 1024,      # <= physical VMEM everywhere
        ),
    )(x2)

    return out2.reshape(*lead, top_k)


if __name__ == "__main__":
    key = jax.random.PRNGKey(0)
    k1, k2, k3 = jax.random.split(key, 3)
    TOP_K = 8

    # (batch, channels, seq_len) -- small shapes consistent with VDCNN usage
    B, C, L = 2, 4, 16
    x = jax.random.normal(k1, (B, C, L), dtype=jnp.float32)
    out = jax.block_until_ready(k_max_pooling(x, top_k=TOP_K))
    assert out.shape == (B, C, TOP_K)
    ref_vals, _ = jax.lax.top_k(x, TOP_K)
    assert jnp.allclose(jnp.sort(out, axis=-1), jnp.sort(ref_vals, axis=-1)), \
        "mismatch vs reference (case 1)"

    # multi-tile grid + ragged rows (22 rows, block_rows=8 -> partial last block)
    B2, C2, L2 = 2, 11, 24
    x2 = jax.random.normal(k2, (B2, C2, L2), dtype=jnp.float32)
    out2 = jax.block_until_ready(k_max_pooling(x2, top_k=TOP_K, block_rows=8))
    assert out2.shape == (B2, C2, TOP_K)
    ref2, _ = jax.lax.top_k(x2, TOP_K)
    assert jnp.allclose(jnp.sort(out2, axis=-1), jnp.sort(ref2, axis=-1)), \
        "mismatch vs reference (case 2)"

    # top_k == L fast path (identity is a valid sorted=False result)
    x3 = jax.random.normal(k3, (2, 4, TOP_K), dtype=jnp.float32)
    out3 = jax.block_until_ready(k_max_pooling(x3, top_k=TOP_K))
    ref3, _ = jax.lax.top_k(x3, TOP_K)
    assert out3.shape == (2, 4, TOP_K)
    assert jnp.allclose(jnp.sort(out3, axis=-1), jnp.sort(ref3, axis=-1)), \
        "mismatch vs reference (case 3)"

    print("KERNEL_OK")
</pallas_src>

<mosaic_0001>
module attributes {stable_mosaic.version = 11 : i64} {
  func.func @_kmax_kernel(%arg0: i32, %arg1: memref<8x16xf32, #tpu.memory_space<vmem>>, %arg2: memref<8x8xf32, #tpu.memory_space<vmem>>) attributes {dimension_semantics = [#tpu.dimension_semantics<parallel>], iteration_bounds = array<i64: 1>, scalar_prefetch = 0 : i64, scratch_operands = 0 : i64, tpu.core_type = #tpu.core_type<tc>, window_params = [{transform_indices = @transform_0, window_bounds = array<i64: 8, 16>}, {transform_indices = @transform_1, window_bounds = array<i64: 8, 8>}]} {
    %c0 = arith.constant 0 : index
    %c0_0 = arith.constant 0 : index
    %0 = vector.load %arg1[%c0, %c0_0] : memref<8x16xf32, #tpu.memory_space<vmem>>, vector<8x16xf32>
    %1 = tpu.iota {dimensions = array<i32: 1>} : vector<8x16xi32>
    %cst = arith.constant dense<0xFF800000> : vector<8xf32>
    %2 = vector.multi_reduction <maximumf>, %0, %cst [1] : vector<8x16xf32> to vector<8xf32>
    %3 = vector.shape_cast %2 : vector<8xf32> to vector<8x1xf32>
    %c0_1 = arith.constant 0 : index
    %c0_2 = arith.constant 0 : index
    %4 = vector.load %arg2[%c0_1, %c0_2] : memref<8x8xf32, #tpu.memory_space<vmem>>, vector<8x1xf32>
    tpu.vector_store %arg2[%c0_1, %c0_2], %3 {strides = array<i32>} : memref<8x8xf32, #tpu.memory_space<vmem>>, vector<8x1xf32>,
    %5 = vector.broadcast %3 : vector<8x1xf32> to vector<8x16xf32>
    %6 = arith.cmpf oeq, %0, %5 : vector<8x16xf32>
    %c16_i32 = arith.constant 16 : i32
    %7 = vector.broadcast %c16_i32 : i32 to vector<8x16xi32>
    %8 = arith.select %6, %1, %7 : vector<8x16xi1>, vector<8x16xi32>
    %cst_3 = arith.constant dense<2147483647> : vector<8xi32>
    %9 = vector.multi_reduction <minsi>, %8, %cst_3 [1] : vector<8x16xi32> to vector<8xi32>
    %10 = vector.shape_cast %9 : vector<8xi32> to vector<8x1xi32>
    %11 = vector.broadcast %10 : vector<8x1xi32> to vector<8x16xi32>
    %12 = arith.cmpi eq, %1, %11 : vector<8x16xi32>
    %cst_4 = arith.constant 0xFF800000 : f32
    %13 = vector.broadcast %cst_4 : f32 to vector<8x16xf32>
    %14 = arith.select %12, %13, %0 : vector<8x16xi1>, vector<8x16xf32>
    %cst_5 = arith.constant dense<0xFF800000> : vector<8xf32>
    %15 = vector.multi_reduction <maximumf>, %14, %cst_5 [1] : vector<8x16xf32> to vector<8xf32>
    %16 = vector.shape_cast %15 : vector<8xf32> to vector<8x1xf32>
    %c0_6 = arith.constant 0 : index
    %c1 = arith.constant 1 : index
    %17 = vector.load %arg2[%c0_6, %c1] : memref<8x8xf32, #tpu.memory_space<vmem>>, vector<8x1xf32>
    tpu.vector_store %arg2[%c0_6, %c1], %16 {strides = array<i32>} : memref<8x8xf32, #tpu.memory_space<vmem>>, vector<8x1xf32>,
    %18 = vector.broadcast %16 : vector<8x1xf32> to vector<8x16xf32>
    %19 = arith.cmpf oeq, %14, %18 : vector<8x16xf32>
    %c16_i32_7 = arith.constant 16 : i32
    %20 = vector.broadcast %c16_i32_7 : i32 to vector<8x16xi32>
    %21 = arith.select %19, %1, %20 : vector<8x16xi1>, vector<8x16xi32>
    %cst_8 = arith.constant dense<2147483647> : vector<8xi32>
    %22 = vector.multi_reduction <minsi>, %21, %cst_8 [1] : vector<8x16xi32> to vector<8xi32>
    %23 = vector.shape_cast %22 : vector<8xi32> to vector<8x1xi32>
    %24 = vector.broadcast %23 : vector<8x1xi32> to vector<8x16xi32>
    %25 = arith.cmpi eq, %1, %24 : vector<8x16xi32>
    %cst_9 = arith.constant 0xFF800000 : f32
    %26 = vector.broadcast %cst_9 : f32 to vector<8x16xf32>
    %27 = arith.select %25, %26, %14 : vector<8x16xi1>, vector<8x16xf32>
    %cst_10 = arith.constant dense<0xFF800000> : vector<8xf32>
    %28 = vector.multi_reduction <maximumf>, %27, %cst_10 [1] : vector<8x16xf32> to vector<8xf32>
    %29 = vector.shape_cast %28 : vector<8xf32> to vector<8x1xf32>
    %c0_11 = arith.constant 0 : index
    %c2 = arith.constant 2 : index
    %30 = vector.load %arg2[%c0_11, %c2] : memref<8x8xf32, #tpu.memory_space<vmem>>, vector<8x1xf32>
    tpu.vector_store %arg2[%c0_11, %c2], %29 {strides = array<i32>} : memref<8x8xf32, #tpu.memory_space<vmem>>, vector<8x1xf32>,
    %31 = vector.broadcast %29 : vector<8x1xf32> to vector<8x16xf32>
    %32 = arith.cmpf oeq, %27, %31 : vector<8x16xf32>
    %c16_i32_12 = arith.constant 16 : i32
    %33 = vector.broadcast %c16_i32_12 : i32 to vector<8x16xi32>
    %34 = arith.select %32, %1, %33 : vector<8x16xi1>, vector<8x16xi32>
    %cst_13 = arith.constant dense<2147483647> : vector<8xi32>
    %35 = vector.multi_reduction <minsi>, %34, %cst_13 [1] : vector<8x16xi32> to vector<8xi32>
    %36 = vector.shape_cast %35 : vector<8xi32> to vector<8x1xi32>
    %37 = vector.broadcast %36 : vector<8x1xi32> to vector<8x16xi32>
    %38 = arith.cmpi eq, %1, %37 : vector<8x16xi32>
    %cst_14 = arith.constant 0xFF800000 : f32
    %39 = vector.broadcast %cst_14 : f32 to vector<8x16xf32>
    %40 = arith.select %38, %39, %27 : vector<8x16xi1>, vector<8x16xf32>
    %cst_15 = arith.constant dense<0xFF800000> : vector<8xf32>
    %41 = vector.multi_reduction <maximumf>, %40, %cst_15 [1] : vector<8x16xf32> to vector<8xf32>
    %42 = vector.shape_cast %41 : vector<8xf32> to vector<8x1xf32>
    %c0_16 = arith.constant 0 : index
    %c3 = arith.constant 3 : index
    %43 = vector.load %arg2[%c0_16, %c3] : memref<8x8xf32, #tpu.memory_space<vmem>>, vector<8x1xf32>
    tpu.vector_store %arg2[%c0_16, %c3], %42 {strides = array<i32>} : memref<8x8xf32, #tpu.memory_space<vmem>>, vector<8x1xf32>,
    %44 = vector.broadcast %42 : vector<8x1xf32> to vector<8x16xf32>
    %45 = arith.cmpf oeq, %40, %44 : vector<8x16xf32>
    %c16_i32_17 = arith.constant 16 : i32
    %46 = vector.broadcast %c16_i32_17 : i32 to vector<8x16xi32>
    %47 = arith.select %45, %1, %46 : vector<8x16xi1>, vector<8x16xi32>
    %cst_18 = arith.constant dense<2147483647> : vector<8xi32>
    %48 = vector.multi_reduction <minsi>, %47, %cst_18 [1] : vector<8x16xi32> to vector<8xi32>
    %49 = vector.shape_cast %48 : vector<8xi32> to vector<8x1xi32>
    %50 = vector.broadcast %49 : vector<8x1xi32> to vector<8x16xi32>
    %51 = arith.cmpi eq, %1, %50 : vector<8x16xi32>
    %cst_19 = arith.constant 0xFF800000 : f32
    %52 = vector.broadcast %cst_19 : f32 to vector<8x16xf32>
    %53 = arith.select %51, %52, %40 : vector<8x16xi1>, vector<8x16xf32>
    %cst_20 = arith.constant dense<0xFF800000> : vector<8xf32>
    %54 = vector.multi_reduction <maximumf>, %53, %cst_20 [1] : vector<8x16xf32> to vector<8xf32>
    %55 = vector.shape_cast %54 : vector<8xf32> to vector<8x1xf32>
    %c0_21 = arith.constant 0 : index
    %c4 = arith.constant 4 : index
    %56 = vector.load %arg2[%c0_21, %c4] : memref<8x8xf32, #tpu.memory_space<vmem>>, vector<8x1xf32>
    tpu.vector_store %arg2[%c0_21, %c4], %55 {strides = array<i32>} : memref<8x8xf32, #tpu.memory_space<vmem>>, vector<8x1xf32>,
    %57 = vector.broadcast %55 : vector<8x1xf32> to vector<8x16xf32>
    %58 = arith.cmpf oeq, %53, %57 : vector<8x16xf32>
    %c16_i32_22 = arith.constant 16 : i32
    %59 = vector.broadcast %c16_i32_22 : i32 to vector<8x16xi32>
    %60 = arith.select %58, %1, %59 : vector<8x16xi1>, vector<8x16xi32>
    %cst_23 = arith.constant dense<2147483647> : vector<8xi32>
    %61 = vector.multi_reduction <minsi>, %60, %cst_23 [1] : vector<8x16xi32> to vector<8xi32>
    %62 = vector.shape_cast %61 : vector<8xi32> to vector<8x1xi32>
    %63 = vector.broadcast %62 : vector<8x1xi32> to vector<8x16xi32>
    %64 = arith.cmpi eq, %1, %63 : vector<8x16xi32>
    %cst_24 = arith.constant 0xFF800000 : f32
    %65 = vector.broadcast %cst_24 : f32 to vector<8x16xf32>
    %66 = arith.select %64, %65, %53 : vector<8x16xi1>, vector<8x16xf32>
    %cst_25 = arith.constant dense<0xFF800000> : vector<8xf32>
    %67 = vector.multi_reduction <maximumf>, %66, %cst_25 [1] : vector<8x16xf32> to vector<8xf32>
    %68 = vector.shape_cast %67 : vector<8xf32> to vector<8x1xf32>
    %c0_26 = arith.constant 0 : index
    %c5 = arith.constant 5 : index
    %69 = vector.load %arg2[%c0_26, %c5] : memref<8x8xf32, #tpu.memory_space<vmem>>, vector<8x1xf32>
    tpu.vector_store %arg2[%c0_26, %c5], %68 {strides = array<i32>} : memref<8x8xf32, #tpu.memory_space<vmem>>, vector<8x1xf32>,
    %70 = vector.broadcast %68 : vector<8x1xf32> to vector<8x16xf32>
    %71 = arith.cmpf oeq, %66, %70 : vector<8x16xf32>
    %c16_i32_27 = arith.constant 16 : i32
    %72 = vector.broadcast %c16_i32_27 : i32 to vector<8x16xi32>
    %73 = arith.select %71, %1, %72 : vector<8x16xi1>, vector<8x16xi32>
    %cst_28 = arith.constant dense<2147483647> : vector<8xi32>
    %74 = vector.multi_reduction <minsi>, %73, %cst_28 [1] : vector<8x16xi32> to vector<8xi32>
    %75 = vector.shape_cast %74 : vector<8xi32> to vector<8x1xi32>
    %76 = vector.broadcast %75 : vector<8x1xi32> to vector<8x16xi32>
    %77 = arith.cmpi eq, %1, %76 : vector<8x16xi32>
    %cst_29 = arith.constant 0xFF800000 : f32
    %78 = vector.broadcast %cst_29 : f32 to vector<8x16xf32>
    %79 = arith.select %77, %78, %66 : vector<8x16xi1>, vector<8x16xf32>
    %cst_30 = arith.constant dense<0xFF800000> : vector<8xf32>
    %80 = vector.multi_reduction <maximumf>, %79, %cst_30 [1] : vector<8x16xf32> to vector<8xf32>
    %81 = vector.shape_cast %80 : vector<8xf32> to vector<8x1xf32>
    %c0_31 = arith.constant 0 : index
    %c6 = arith.constant 6 : index
    %82 = vector.load %arg2[%c0_31, %c6] : memref<8x8xf32, #tpu.memory_space<vmem>>, vector<8x1xf32>
    tpu.vector_store %arg2[%c0_31, %c6], %81 {strides = array<i32>} : memref<8x8xf32, #tpu.memory_space<vmem>>, vector<8x1xf32>,
    %83 = vector.broadcast %81 : vector<8x1xf32> to vector<8x16xf32>
    %84 = arith.cmpf oeq, %79, %83 : vector<8x16xf32>
    %c16_i32_32 = arith.constant 16 : i32
    %85 = vector.broadcast %c16_i32_32 : i32 to vector<8x16xi32>
    %86 = arith.select %84, %1, %85 : vector<8x16xi1>, vector<8x16xi32>
    %cst_33 = arith.constant dense<2147483647> : vector<8xi32>
    %87 = vector.multi_reduction <minsi>, %86, %cst_33 [1] : vector<8x16xi32> to vector<8xi32>
    %88 = vector.shape_cast %87 : vector<8xi32> to vector<8x1xi32>
    %89 = vector.broadcast %88 : vector<8x1xi32> to vector<8x16xi32>
    %90 = arith.cmpi eq, %1, %89 : vector<8x16xi32>
    %cst_34 = arith.constant 0xFF800000 : f32
    %91 = vector.broadcast %cst_34 : f32 to vector<8x16xf32>
    %92 = arith.select %90, %91, %79 : vector<8x16xi1>, vector<8x16xf32>
    %cst_35 = arith.constant dense<0xFF800000> : vector<8xf32>
    %93 = vector.multi_reduction <maximumf>, %92, %cst_35 [1] : vector<8x16xf32> to vector<8xf32>
    %94 = vector.shape_cast %93 : vector<8xf32> to vector<8x1xf32>
    %c0_36 = arith.constant 0 : index
    %c7 = arith.constant 7 : index
    %95 = vector.load %arg2[%c0_36, %c7] : memref<8x8xf32, #tpu.memory_space<vmem>>, vector<8x1xf32>
    tpu.vector_store %arg2[%c0_36, %c7], %94 {strides = array<i32>} : memref<8x8xf32, #tpu.memory_space<vmem>>, vector<8x1xf32>,
    return
  }
  func.func @transform_0(%arg0: i32) -> (i32, i32) {
    %c0_i32 = arith.constant 0 : i32
    %c0_i32_0 = arith.constant 0 : i32
    return %arg0, %c0_i32 : i32, i32
  }
  func.func @transform_1(%arg0: i32) -> (i32, i32) {
    %c0_i32 = arith.constant 0 : i32
    %c0_i32_0 = arith.constant 0 : i32
    return %arg0, %c0_i32 : i32, i32
  }
}

</mosaic_0001>

<llo_original>
// kernel: tpu_custom_call.1
$region0: #{tpu_custom_call.1}
  #allocation0 [shape = 'u32[]', space=smem, size = 0x4, offset = 0x4, fixed_abs, tag = 'smem constant byte address 0x4 - core index']
  #allocation1 [shape = 'u32[144,128]{1,0:T(1,128)}', space=vmem, size = 0x12000, scoped, tag = 'internal scratch']
  %s0 = inlined_call_operand.hbm [shape: f32[8,16], index: 0, kind: input, shape index: {}]
  %s1 = inlined_call_operand.hbm [shape: f32[8,8], index: 1, kind: output, shape index: {}]
  %s2 = sld [smem:[#allocation0]]
  $region18: #{tpu_custom_call.1} parent=0
    _
  %s4 = ssub.s32 1, %s2
  %s5 = scalar_select 0, %s4, %s2
  $region1: #{tpu_custom_call.1} parent=0
    #allocation2 [shape = 'u8[4096]{0}', space=vmem, size = 0x1000, scoped, tag = 'input window, operand 0, single buffered']
    #allocation3 [shape = 's32[1]{0}', space=sflag, size = 0x4, scoped, tag = 'scoped memory for tpu_custom_call.1']
    #allocation4 [shape = 's32[1]{0}', space=sflag, size = 0x4, scoped, tag = 'scoped memory for tpu_custom_call.1']
    #allocation5 [shape = 'u8[4096]{0}', space=vmem, size = 0x1000, scoped, tag = 'output window, operand 0, single buffered']
    %6 = vsyncpa [#allocation3], 0
    %7 = vsyncpa [#allocation4], 0
    // Predicated region
    $region2: #{tpu_custom_call.1} parent=1 // pred_check
      _
    $region3: #{tpu_custom_call.1} parent=1 // pred_check_branch
      %9 = sbr.rel (0) target = $region5
    $region4: #{tpu_custom_call.1} parent=1 // pred_region
      %s11 = ssub.s32 128, 128
      %12 = vsyncadd [#allocation3], %s11
      %s14 = sshll.u32 [#allocation2], 4
      %s15 = int_to_ptr.vmem [resolvable:$true] %s14
      %17 = dma.hbm_to_vmem [thread:$0]  %s0, 128, %s15, [#allocation3]
    $region5: #{tpu_custom_call.1} parent=1 // pred_fallthru
      _
    // Predicated region
    $region6: #{tpu_custom_call.1} parent=1 // pred_check
      _
    $region7: #{tpu_custom_call.1} parent=1 // pred_check_branch
      %19 = sbr.rel (0) target = $region9
    $region8: #{tpu_custom_call.1} parent=1 // pred_region
      %20 = dma.done [#allocation3], 128
    $region9: #{tpu_custom_call.1} parent=1 // pred_fallthru
      _
    %v21 = vld [vmem:[#allocation2] sm:$0xff]
    %v22 = vlaneseq
    %v23 = vand.u32 %v22, 127
    %vm24 = vcmask 130048
    %v25 = vsel %vm24, %v21, -inf
    %26 = vmax.xlane.f32.xlu0 %v25
    %v27 = vpop.xlane.xlu0 %26
    %vm28 = vcmask 7168
    %29 = vst.msk [vmem:[#allocation5] sm:$0xff] %vm28, %v27
    %vm30 = vcmp.eq.f32.partialorder %v21, %v27
    %v31 = vsel %vm30, %v23, 16
    %v32 = vsel %vm24, %v31, 2147483647
    %v33 = vand.u32 %v32, 65535
    %v34 = vshra.s32 %v32, 16
    %v35 = vcvt.s32.f32 %v33
    %v36 = vcvt.s32.f32 %v34
    %37 = vmin.xlane.f32.xlu0 %v36
    %v38 = vpop.xlane.xlu0 %37
    %vm39 = vcmp.eq.f32.partialorder %v36, %v38
    %v40 = vsel %vm39, %v35, inf
    %41 = vmin.xlane.f32.xlu0 %v40
    %v42 = vpop.xlane.xlu0 %41
    %v43 = vcvt.f32.s32 %v42
    %v44 = vcvt.f32.s32 %v38
    %v45 = vshll.u32 %v44, 16
    %v46 = vadd.s32 %v45, %v43
    %vm47 = vcmp.eq.s32.totalorder %v23, %v46
    %v48 = vsel %vm47, -inf, %v21
    %v49 = vsel %vm24, %v48, -inf
    %50 = vmax.xlane.f32.xlu0 %v49
    %v51 = vpop.xlane.xlu0 %50
    %vm52 = vcmask 15368
    %53 = vst.msk [vmem:[#allocation5] sm:$0xff] %vm52, %v51
    %vm54 = vcmp.eq.f32.partialorder %v48, %v51
    %v55 = vsel %vm54, %v23, 16
    %v56 = vsel %vm24, %v55, 2147483647
    %v57 = vand.u32 %v56, 65535
    %v58 = vshra.s32 %v56, 16
    %v59 = vcvt.s32.f32 %v57
    %v60 = vcvt.s32.f32 %v58
    %61 = vmin.xlane.f32.xlu0 %v60
    %v62 = vpop.xlane.xlu0 %61
    %vm63 = vcmp.eq.f32.partialorder %v60, %v62
    %v64 = vsel %vm63, %v59, inf
    %65 = vmin.xlane.f32.xlu0 %v64
    %v66 = vpop.xlane.xlu0 %65
    %v67 = vcvt.f32.s32 %v66
    %v68 = vcvt.f32.s32 %v62
    %v69 = vshll.u32 %v68, 16
    %v70 = vadd.s32 %v69, %v67
    %vm71 = vcmp.eq.s32.totalorder %v23, %v70
    %v72 = vsel %vm71, -inf, %v48
    %v73 = vsel %vm24, %v72, -inf
    %74 = vmax.xlane.f32.xlu0 %v73
    %v75 = vpop.xlane.xlu0 %74
    %vm76 = vcmask 23568
    %77 = vst.msk [vmem:[#allocation5] sm:$0xff] %vm76, %v75
    %vm78 = vcmp.eq.f32.partialorder %v72, %v75
    %v79 = vsel %vm78, %v23, 16
    %v80 = vsel %vm24, %v79, 2147483647
    %v81 = vand.u32 %v80, 65535
    %v82 = vshra.s32 %v80, 16
    %v83 = vcvt.s32.f32 %v81
    %v84 = vcvt.s32.f32 %v82
    %85 = vmin.xlane.f32.xlu0 %v84
    %v86 = vpop.xlane.xlu0 %85
    %vm87 = vcmp.eq.f32.partialorder %v84, %v86
    %v88 = vsel %vm87, %v83, inf
    %89 = vmin.xlane.f32.xlu0 %v88
    %v90 = vpop.xlane.xlu0 %89
    %v91 = vcvt.f32.s32 %v90
    %v92 = vcvt.f32.s32 %v86
    %v93 = vshll.u32 %v92, 16
    %v94 = vadd.s32 %v93, %v91
    %vm95 = vcmp.eq.s32.totalorder %v23, %v94
    %v96 = vsel %vm95, -inf, %v72
    %v97 = vsel %vm24, %v96, -inf
    %98 = vmax.xlane.f32.xlu0 %v97
    %v99 = vpop.xlane.xlu0 %98
    %vm100 = vcmask 31768
    %101 = vst.msk [vmem:[#allocation5] sm:$0xff] %vm100, %v99
    %vm102 = vcmp.eq.f32.partialorder %v96, %v99
    %v103 = vsel %vm102, %v23, 16
    %v104 = vsel %vm24, %v103, 2147483647
    %v105 = vand.u32 %v104, 65535
    %v106 = vshra.s32 %v104, 16
    %v107 = vcvt.s32.f32 %v105
    %v108 = vcvt.s32.f32 %v106
    %109 = vmin.xlane.f32.xlu0 %v108
    %v110 = vpop.xlane.xlu0 %109
    %vm111 = vcmp.eq.f32.partialorder %v108, %v110
    %v112 = vsel %vm111, %v107, inf
    %113 = vmin.xlane.f32.xlu0 %v112
    %v114 = vpop.xlane.xlu0 %113
    %v115 = vcvt.f32.s32 %v114
    %v116 = vcvt.f32.s32 %v110
    %v117 = vshll.u32 %v116, 16
    %v118 = vadd.s32 %v117, %v115
    %vm119 = vcmp.eq.s32.totalorder %v23, %v118
    %v120 = vsel %vm119, -inf, %v96
    %v121 = vsel %vm24, %v120, -inf
    %122 = vmax.xlane.f32.xlu0 %v121
    %v123 = vpop.xlane.xlu0 %122
    %vm124 = vcmask 39968
    %125 = vst.msk [vmem:[#allocation5] sm:$0xff] %vm124, %v123
    %vm126 = vcmp.eq.f32.partialorder %v120, %v123
    %v127 = vsel %vm126, %v23, 16
    %v128 = vsel %vm24, %v127, 2147483647
    %v129 = vand.u32 %v128, 65535
    %v130 = vshra.s32 %v128, 16
    %v131 = vcvt.s32.f32 %v129
    %v132 = vcvt.s32.f32 %v130
    %133 = vmin.xlane.f32.xlu0 %v132
    %v134 = vpop.xlane.xlu0 %133
    %vm135 = vcmp.eq.f32.partialorder %v132, %v134
    %v136 = vsel %vm135, %v131, inf
    %137 = vmin.xlane.f32.xlu0 %v136
    %v138 = vpop.xlane.xlu0 %137
    %v139 = vcvt.f32.s32 %v138
    %v140 = vcvt.f32.s32 %v134
    %v141 = vshll.u32 %v140, 16
    %v142 = vadd.s32 %v141, %v139
    %vm143 = vcmp.eq.s32.totalorder %v23, %v142
    %v144 = vsel %vm143, -inf, %v120
    %v145 = vsel %vm24, %v144, -inf
    %146 = vmax.xlane.f32.xlu0 %v145
    %v147 = vpop.xlane.xlu0 %146
    %vm148 = vcmask 48168
    %149 = vst.msk [vmem:[#allocation5] sm:$0xff] %vm148, %v147
    %vm150 = vcmp.eq.f32.partialorder %v144, %v147
    %v151 = vsel %vm150, %v23, 16
    %v152 = vsel %vm24, %v151, 2147483647
    %v153 = vand.u32 %v152, 65535
    %v154 = vshra.s32 %v152, 16
    %v155 = vcvt.s32.f32 %v153
    %v156 = vcvt.s32.f32 %v154
    %157 = vmin.xlane.f32.xlu0 %v156
    %v158 = vpop.xlane.xlu0 %157
    %vm159 = vcmp.eq.f32.partialorder %v156, %v158
    %v160 = vsel %vm159, %v155, inf
    %161 = vmin.xlane.f32.xlu0 %v160
    %v162 = vpop.xlane.xlu0 %161
    %v163 = vcvt.f32.s32 %v162
    %v164 = vcvt.f32.s32 %v158
    %v165 = vshll.u32 %v164, 16
    %v166 = vadd.s32 %v165, %v163
    %vm167 = vcmp.eq.s32.totalorder %v23, %v166
    %v168 = vsel %vm167, -inf, %v144
    %v169 = vsel %vm24, %v168, -inf
    %170 = vmax.xlane.f32.xlu0 %v169
    %v171 = vpop.xlane.xlu0 %170
    %vm172 = vcmask 56368
    %173 = vst.msk [vmem:[#allocation5] sm:$0xff] %vm172, %v171
    %vm174 = vcmp.eq.f32.partialorder %v168, %v171
    %v175 = vsel %vm174, %v23, 16
    %v176 = vsel %vm24, %v175, 2147483647
    %v177 = vand.u32 %v176, 65535
    %v178 = vshra.s32 %v176, 16
    %v179 = vcvt.s32.f32 %v177
    %v180 = vcvt.s32.f32 %v178
    %181 = vmin.xlane.f32.xlu0 %v180
    %v182 = vpop.xlane.xlu0 %181
    %vm183 = vcmp.eq.f32.partialorder %v180, %v182
    %v184 = vsel %vm183, %v179, inf
    %185 = vmin.xlane.f32.xlu0 %v184
    %v186 = vpop.xlane.xlu0 %185
    %v187 = vcvt.f32.s32 %v186
    %v188 = vcvt.f32.s32 %v182
    %v189 = vshll.u32 %v188, 16
    %v190 = vadd.s32 %v189, %v187
    %vm191 = vcmp.eq.s32.totalorder %v23, %v190
    %v192 = vsel %vm191, -inf, %v168
    %v193 = vsel %vm24, %v192, -inf
    %194 = vmax.xlane.f32.xlu0 %v193
    %v195 = vpop.xlane.xlu0 %194
    %vm196 = vcmask 64568
    %197 = vst.msk [vmem:[#allocation5] sm:$0xff] %vm196, %v195
    // Predicated region
    $region10: #{tpu_custom_call.1} parent=1 // pred_check
      _
    $region11: #{tpu_custom_call.1} parent=1 // pred_check_branch
      %199 = sbr.rel (0) target = $region13
    $region12: #{tpu_custom_call.1} parent=1 // pred_region
      %s201 = ssub.s32 128, 128
      %202 = vsyncadd [#allocation4], %s201
      %s204 = sshll.u32 [#allocation5], 4
      %s205 = int_to_ptr.vmem [resolvable:$true] %s204
      %207 = dma.vmem_to_hbm [thread:$0]  %s205, 128, %s1, [#allocation4]
    $region13: #{tpu_custom_call.1} parent=1 // pred_fallthru
      _
    // Predicated region
    $region14: #{tpu_custom_call.1} parent=1 // pred_check
      _
    $region15: #{tpu_custom_call.1} parent=1 // pred_check_branch
      %209 = sbr.rel (0) target = $region17
    $region16: #{tpu_custom_call.1} parent=1 // pred_region
      %210 = dma.done [#allocation4], 128
    $region17: #{tpu_custom_call.1} parent=1 // pred_fallthru
      _
    %211 = vsyncpa [#allocation3], 1
    %212 = vsyncpa [#allocation4], 1

</llo_original>
